<compile_context>
chip_gen: v7x
topology: tpu7x:2x2x1
jax: 0.10.0
libtpu: 0.0.40
codegen_flags: <defaults>
</compile_context>

<pallas_src>
import functools

import jax
import jax.numpy as jnp
from jax.experimental import pallas as pl
from jax.experimental.pallas import tpu as pltpu

_NEG_PAD = jnp.float32(-1e30)          # padded-logit bias -> exp(.) == 0
_VMEM_LIMIT = 48 * 1024 * 1024         # fits v5e/v6e (128 MiB) and v7x (64 MiB)


def _fast_recip(x):
    # EUP approximate reciprocal (free slot) + one Newton step to keep accuracy.
    r = pl.reciprocal(x, approx=True)
    return r * (2.0 - x * r)


def _encoder_kernel(x_ref, we_ref, be_ref, wt_ref, bt_ref,
                    zdistr_ref, topic_ref, acc_ref, *, inv_tau):
    """grid = (B//tb, V//tk): batch tiles ("parallel") x vocab reduction ("arbitrary")."""
    k = pl.program_id(1)

    # Fold the encoder bias into the accumulator init (no epilogue add).
    @pl.when(k == 0)
    def _():
        acc_ref[...] = jnp.broadcast_to(be_ref[...], acc_ref.shape)

    acc_ref[...] += jnp.dot(x_ref[...], we_ref[...],
                            preferred_element_type=jnp.float32)

    @pl.when(k == pl.num_programs(1) - 1)
    def _():
        z_logits = acc_ref[...]                                  # (tb, n_z_pad) f32
        # One shared max/shift for both softmaxes.
        m = jnp.max(z_logits, axis=-1, keepdims=True)
        shifted = z_logits - m
        e = jnp.exp(shifted)
        z_distr = e * _fast_recip(jnp.sum(e, axis=-1, keepdims=True))
        if inv_tau == 1.0:
            z_soft = z_distr                                      # tau == 1 fast path
        else:
            e_t = jnp.exp(shifted * inv_tau)
            z_soft = e_t * _fast_recip(jnp.sum(e_t, axis=-1, keepdims=True))
        zdistr_ref[...] = z_distr.astype(zdistr_ref.dtype)

        topic = jnp.dot(z_soft.astype(wt_ref.dtype), wt_ref[...],
                        preferred_element_type=jnp.float32) + bt_ref[...]
        topic_ref[...] = topic.astype(topic_ref.dtype)


def _decoder_kernel(topic_ref, wd_ref, bd_ref, xprime_ref):
    """grid = (V//tn, B//tb), both "parallel"; sigmoid in f32, one wide store."""
    logits = jnp.dot(topic_ref[...].astype(wd_ref.dtype), wd_ref[...],
                     preferred_element_type=jnp.float32) + bd_ref[...]
    xprime_ref[...] = jax.nn.sigmoid(logits).astype(xprime_ref.dtype)


def _pick_vocab_tile(dim, preferred=512):
    if dim <= preferred:
        return dim
    for t in (preferred, 256, 128):
        if dim % t == 0:
            return t
    # TODO(synk): pad odd vocab sizes to a multiple of 128 instead of full-dim blocks.
    return dim


def _pick_batch_tile(b, preferred=256):
    if b <= preferred or b % preferred == 0:
        return min(b, preferred)
    return b


def d_vae_forward(x, prep, tau=1.0):
    """x: (B, vocab) f32.  prep: output of prepare_params.  Returns (x_prime, z_distr)."""
    B, V = x.shape
    n_z = prep["n_z"]
    n_z_pad = prep["W_enc"].shape[1]
    z_dim = prep["W_topic"].shape[1]

    tk = _pick_vocab_tile(V)        # encoder reduction tile (vocab rows of W_enc)
    tn = _pick_vocab_tile(V)        # decoder output-column tile (vocab cols of W_dec)
    tb = _pick_batch_tile(B)        # batch tile (MXU M dimension)

    x_bf16 = x.astype(jnp.bfloat16)

    # ---- encoder + softmax + topic_emb -------------------------------------
    z_distr_pad, topic_vec = pl.pallas_call(
        functools.partial(_encoder_kernel, inv_tau=1.0 / float(tau)),
        grid=(B // tb, V // tk),
        in_specs=[
            pl.BlockSpec((tb, tk), lambda b, k: (b, k)),            # x
            pl.BlockSpec((tk, n_z_pad), lambda b, k: (k, 0)),       # W_enc (bf16)
            pl.BlockSpec((1, n_z_pad), lambda b, k: (0, 0)),        # b_enc (f32, padded)
            pl.BlockSpec((n_z_pad, z_dim), lambda b, k: (0, 0)),    # W_topic (bf16)
            pl.BlockSpec((1, z_dim), lambda b, k: (0, 0)),          # b_topic (f32)
        ],
        out_specs=(
            pl.BlockSpec((tb, n_z_pad), lambda b, k: (b, 0)),       # z_distr (padded)
            pl.BlockSpec((tb, z_dim), lambda b, k: (b, 0)),         # topic_vec
        ),
        out_shape=(
            jax.ShapeDtypeStruct((B, n_z_pad), jnp.float32),
            jax.ShapeDtypeStruct((B, z_dim), jnp.float32),
        ),
        scratch_shapes=[pltpu.VMEM((tb, n_z_pad), jnp.float32)],
        compiler_params=pltpu.CompilerParams(
            dimension_semantics=("parallel", "arbitrary"),
            vmem_limit_bytes=_VMEM_LIMIT,
        ),
    )(x_bf16, prep["W_enc"], prep["b_enc"], prep["W_topic"], prep["b_topic"])

    # ---- decoder + sigmoid ---------------------------------------------------
    x_prime = pl.pallas_call(
        _decoder_kernel,
        grid=(V // tn, B // tb),
        in_specs=[
            pl.BlockSpec((tb, z_dim), lambda j, b: (b, 0)),         # topic_vec
            pl.BlockSpec((z_dim, tn), lambda j, b: (0, j)),         # W_dec (bf16)
            pl.BlockSpec((1, tn), lambda j, b: (0, j)),             # b_dec (f32)
        ],
        out_specs=pl.BlockSpec((tb, tn), lambda j, b: (b, j)),
        out_shape=jax.ShapeDtypeStruct((B, V), jnp.float32),
        compiler_params=pltpu.CompilerParams(
            dimension_semantics=("parallel", "parallel"),
            vmem_limit_bytes=_VMEM_LIMIT,
        ),
    )(topic_vec, prep["W_dec"], prep["b_dec"])

    # slice the lane-padding off z_distr outside the kernel (lane-dense stores inside)
    return x_prime, z_distr_pad[:, :n_z]


# ----------------------------- params / reference -----------------------------

def init_params(key, vocab_size, n_z, z_dim):
    """nn.Linear-style init; weights stored pre-transposed as [in, out], f32."""
    ks = jax.random.split(key, 6)

    def lin(kw, kb, fan_in, fan_out):
        bound = 1.0 / jnp.sqrt(fan_in)
        W = jax.random.uniform(kw, (fan_in, fan_out), jnp.float32, -bound, bound)
        b = jax.random.uniform(kb, (1, fan_out), jnp.float32, -bound, bound)
        return W, b

    W_enc, b_enc = lin(ks[0], ks[1], vocab_size, n_z)
    W_topic, b_topic = lin(ks[2], ks[3], n_z, z_dim)
    W_dec, b_dec = lin(ks[4], ks[5], z_dim, vocab_size)
    return dict(W_enc=W_enc, b_enc=b_enc, W_topic=W_topic, b_topic=b_topic,
                W_dec=W_dec, b_dec=b_dec)


def prepare_params(params):
    """One-time prep: pad n_z to a multiple of 128 lanes and cast matmul weights
    to bf16 (halves HBM weight traffic; MXU is bf16-native).  Padded encoder-bias
    lanes get a large negative value so padded logits vanish under softmax."""
    n_z = params["W_enc"].shape[1]
    n_z_pad = ((n_z + 127) // 128) * 128
    pad = n_z_pad - n_z
    W_enc = jnp.pad(params["W_enc"], ((0, 0), (0, pad)))
    b_enc = jnp.pad(params["b_enc"], ((0, 0), (0, pad)), constant_values=_NEG_PAD)
    W_topic = jnp.pad(params["W_topic"], ((0, pad), (0, 0)))
    return dict(
        n_z=n_z,
        W_enc=W_enc.astype(jnp.bfloat16),
        b_enc=b_enc.astype(jnp.float32),
        W_topic=W_topic.astype(jnp.bfloat16),
        b_topic=params["b_topic"].astype(jnp.float32),
        W_dec=params["W_dec"].astype(jnp.bfloat16),
        b_dec=params["b_dec"].astype(jnp.float32),
    )


def reference_forward(x, params, tau=1.0):
    """Pure-JAX reference mirroring the kernel's bf16 matmul inputs (f32 accum)."""
    bf = jnp.bfloat16
    z_logits = jnp.dot(x.astype(bf), params["W_enc"].astype(bf),
                       preferred_element_type=jnp.float32) + params["b_enc"]
    z_distr = jax.nn.softmax(z_logits, axis=-1)
    z_soft = jax.nn.softmax(z_logits / tau, axis=-1)
    topic = jnp.dot(z_soft.astype(bf), params["W_topic"].astype(bf),
                    preferred_element_type=jnp.float32) + params["b_topic"]
    x_prime = jax.nn.sigmoid(
        jnp.dot(topic.astype(bf), params["W_dec"].astype(bf),
                preferred_element_type=jnp.float32) + params["b_dec"])
    return x_prime, z_distr


if __name__ == "__main__":
    # Small shapes consistent with the module (scaled-down defaults).
    B, VOCAB, N_Z, Z_DIM = 8, 1024, 64, 256

    key = jax.random.PRNGKey(0)
    kx, kp = jax.random.split(key)
    x = jax.random.uniform(kx, (B, VOCAB), jnp.float32)   # bag-of-words-ish input
    params = init_params(kp, VOCAB, N_Z, Z_DIM)
    prep = prepare_params(params)

    for tau in (1.0, 0.7):   # exercise both the tau==1 fast path and the general path
        x_prime, z_distr = d_vae_forward(x, prep, tau=tau)
        jax.block_until_ready((x_prime, z_distr))

        ref_xp, ref_zd = reference_forward(x, params, tau=tau)
        assert x_prime.shape == (B, VOCAB) and z_distr.shape == (B, N_Z)
        assert jnp.allclose(x_prime, ref_xp, atol=1e-3, rtol=1e-3), f"x_prime mismatch (tau={tau})"
        assert jnp.allclose(z_distr, ref_zd, atol=1e-3, rtol=1e-3), f"z_distr mismatch (tau={tau})"

    print("KERNEL_OK")
</pallas_src>

<mosaic_0001>
module attributes {stable_mosaic.version = 11 : i64} {
  func.func @_encoder_kernel(%arg0: i32, %arg1: i32, %arg2: memref<8x512xbf16, #tpu.memory_space<vmem>>, %arg3: memref<512x128xbf16, #tpu.memory_space<vmem>>, %arg4: memref<1x128xf32, #tpu.memory_space<vmem>>, %arg5: memref<128x256xbf16, #tpu.memory_space<vmem>>, %arg6: memref<1x256xf32, #tpu.memory_space<vmem>>, %arg7: memref<8x128xf32, #tpu.memory_space<vmem>>, %arg8: memref<8x256xf32, #tpu.memory_space<vmem>>, %arg9: memref<8x128xf32, #tpu.memory_space<vmem>>) attributes {dimension_semantics = [#tpu.dimension_semantics<parallel>, #tpu.dimension_semantics<arbitrary>], iteration_bounds = array<i64: 1, 2>, scalar_prefetch = 0 : i64, scratch_operands = 1 : i64, tpu.core_type = #tpu.core_type<tc>, window_params = [{transform_indices = @transform_0, window_bounds = array<i64: 8, 512>}, {transform_indices = @transform_1, window_bounds = array<i64: 512, 128>}, {pipeline_mode = #tpu.pipeline_mode<synchronous>, transform_indices = @transform_2, window_bounds = array<i64: 1, 128>}, {pipeline_mode = #tpu.pipeline_mode<synchronous>, transform_indices = @transform_3, window_bounds = array<i64: 128, 256>}, {pipeline_mode = #tpu.pipeline_mode<synchronous>, transform_indices = @transform_4, window_bounds = array<i64: 1, 256>}, {transform_indices = @transform_5, window_bounds = array<i64: 8, 128>}, {transform_indices = @transform_6, window_bounds = array<i64: 8, 256>}]} {
    %c0_i32 = arith.constant 0 : i32
    %0 = arith.cmpi eq, %arg1, %c0_i32 : i32
    %1 = arith.extui %0 : i1 to i32
    %c0_i32_0 = arith.constant 0 : i32
    %2 = arith.cmpi ne, %1, %c0_i32_0 : i32
    scf.if %2 {
      %c0_9 = arith.constant 0 : index
      %c0_10 = arith.constant 0 : index
      %12 = vector.load %arg4[%c0_9, %c0_10] : memref<1x128xf32, #tpu.memory_space<vmem>>, vector<1x128xf32>
      %13 = vector.shape_cast %12 : vector<1x128xf32> to vector<1x128xf32>
      %14 = vector.broadcast %13 : vector<1x128xf32> to vector<8x128xf32>
      %c0_11 = arith.constant 0 : index
      %c0_12 = arith.constant 0 : index
      %15 = vector.load %arg9[%c0_11, %c0_12] : memref<8x128xf32, #tpu.memory_space<vmem>>, vector<8x128xf32>
      tpu.vector_store %arg9[%c0_11, %c0_12], %14 {strides = array<i32>} : memref<8x128xf32, #tpu.memory_space<vmem>>, vector<8x128xf32>,
    } else {
    }
    %c0 = arith.constant 0 : index
    %c0_1 = arith.constant 0 : index
    %3 = vector.load %arg9[%c0, %c0_1] : memref<8x128xf32, #tpu.memory_space<vmem>>, vector<8x128xf32>
    %c0_2 = arith.constant 0 : index
    %c0_3 = arith.constant 0 : index
    %4 = vector.load %arg2[%c0_2, %c0_3] : memref<8x512xbf16, #tpu.memory_space<vmem>>, vector<8x512xbf16>
    %c0_4 = arith.constant 0 : index
    %c0_5 = arith.constant 0 : index
    %5 = vector.load %arg3[%c0_4, %c0_5] : memref<512x128xbf16, #tpu.memory_space<vmem>>, vector<512x128xbf16>
    %cst = arith.constant dense<0.000000e+00> : vector<8x128xf32>
    %6 = tpu.matmul %4, %5, %cst {dimension_numbers = #tpu.dot_dimension_numbers<[1], [0], [0], [1], [0, 0, 1, 1], [], []>} : vector<8x512xbf16>, vector<512x128xbf16>, vector<8x128xf32> -> vector<8x128xf32>
    %7 = arith.addf %3, %6 : vector<8x128xf32>
    %c0_6 = arith.constant 0 : index
    %c0_7 = arith.constant 0 : index
    %8 = vector.load %arg9[%c0_6, %c0_7] : memref<8x128xf32, #tpu.memory_space<vmem>>, vector<8x128xf32>
    tpu.vector_store %arg9[%c0_6, %c0_7], %7 {strides = array<i32>} : memref<8x128xf32, #tpu.memory_space<vmem>>, vector<8x128xf32>,
    %c1_i32 = arith.constant 1 : i32
    %9 = arith.cmpi eq, %arg1, %c1_i32 : i32
    %10 = arith.extui %9 : i1 to i32
    %c0_i32_8 = arith.constant 0 : i32
    %11 = arith.cmpi ne, %10, %c0_i32_8 : i32
    scf.if %11 {
      %c0_9 = arith.constant 0 : index
      %c0_10 = arith.constant 0 : index
      %12 = vector.load %arg9[%c0_9, %c0_10] : memref<8x128xf32, #tpu.memory_space<vmem>>, vector<8x128xf32>
      %cst_11 = arith.constant dense<0xFF800000> : vector<8xf32>
      %13 = vector.multi_reduction <maximumf>, %12, %cst_11 [1] : vector<8x128xf32> to vector<8xf32>
      %14 = vector.shape_cast %13 : vector<8xf32> to vector<8x1xf32>
      %15 = vector.broadcast %14 : vector<8x1xf32> to vector<8x128xf32>
      %16 = arith.subf %12, %15 : vector<8x128xf32>
      %17 = math.exp %16 : vector<8x128xf32>
      %cst_12 = arith.constant dense<0.000000e+00> : vector<8xf32>
      %18 = vector.multi_reduction <add>, %17, %cst_12 [1] : vector<8x128xf32> to vector<8xf32>
      %19 = vector.shape_cast %18 : vector<8xf32> to vector<8x1xf32>
      %20 = tpu.reciprocal %19 {approx = true} : vector<8x1xf32> -> vector<8x1xf32>
      %21 = arith.mulf %19, %20 : vector<8x1xf32>
      %cst_13 = arith.constant 2.000000e+00 : f32
      %22 = vector.broadcast %cst_13 : f32 to vector<8x1xf32>
      %23 = arith.subf %22, %21 : vector<8x1xf32>
      %24 = arith.mulf %20, %23 : vector<8x1xf32>
      %25 = vector.broadcast %24 : vector<8x1xf32> to vector<8x128xf32>
      %26 = arith.mulf %17, %25 : vector<8x128xf32>
      %c0_14 = arith.constant 0 : index
      %c0_15 = arith.constant 0 : index
      %27 = vector.load %arg7[%c0_14, %c0_15] : memref<8x128xf32, #tpu.memory_space<vmem>>, vector<8x128xf32>
      tpu.vector_store %arg7[%c0_14, %c0_15], %26 {strides = array<i32>} : memref<8x128xf32, #tpu.memory_space<vmem>>, vector<8x128xf32>,
      %28 = arith.truncf %26 : vector<8x128xf32> to vector<8x128xbf16>
      %c0_16 = arith.constant 0 : index
      %c0_17 = arith.constant 0 : index
      %29 = vector.load %arg5[%c0_16, %c0_17] : memref<128x256xbf16, #tpu.memory_space<vmem>>, vector<128x256xbf16>
      %cst_18 = arith.constant dense<0.000000e+00> : vector<8x256xf32>
      %30 = tpu.matmul %28, %29, %cst_18 {dimension_numbers = #tpu.dot_dimension_numbers<[1], [0], [0], [1], [0, 0, 1, 1], [], []>} : vector<8x128xbf16>, vector<128x256xbf16>, vector<8x256xf32> -> vector<8x256xf32>
      %c0_19 = arith.constant 0 : index
      %c0_20 = arith.constant 0 : index
      %31 = vector.load %arg6[%c0_19, %c0_20] : memref<1x256xf32, #tpu.memory_space<vmem>>, vector<1x256xf32>
      %32 = vector.broadcast %31 : vector<1x256xf32> to vector<8x256xf32>
      %33 = arith.addf %30, %32 : vector<8x256xf32>
      %c0_21 = arith.constant 0 : index
      %c0_22 = arith.constant 0 : index
      %34 = vector.load %arg8[%c0_21, %c0_22] : memref<8x256xf32, #tpu.memory_space<vmem>>, vector<8x256xf32>
      tpu.vector_store %arg8[%c0_21, %c0_22], %33 {strides = array<i32>} : memref<8x256xf32, #tpu.memory_space<vmem>>, vector<8x256xf32>,
    } else {
    }
    return
  }
  func.func @transform_0(%arg0: i32, %arg1: i32) -> (i32, i32) {
    %c0_i32 = arith.constant 0 : i32
    return %arg0, %arg1 : i32, i32
  }
  func.func @transform_1(%arg0: i32, %arg1: i32) -> (i32, i32) {
    %c0_i32 = arith.constant 0 : i32
    %c0_i32_0 = arith.constant 0 : i32
    return %arg1, %c0_i32 : i32, i32
  }
  func.func @transform_2(%arg0: i32, %arg1: i32) -> (i32, i32) {
    %c0_i32 = arith.constant 0 : i32
    %c0_i32_0 = arith.constant 0 : i32
    %c0_i32_1 = arith.constant 0 : i32
    return %c0_i32, %c0_i32_0 : i32, i32
  }
  func.func @transform_3(%arg0: i32, %arg1: i32) -> (i32, i32) {
    %c0_i32 = arith.constant 0 : i32
    %c0_i32_0 = arith.constant 0 : i32
    %c0_i32_1 = arith.constant 0 : i32
    return %c0_i32, %c0_i32_0 : i32, i32
  }
  func.func @transform_4(%arg0: i32, %arg1: i32) -> (i32, i32) {
    %c0_i32 = arith.constant 0 : i32
    %c0_i32_0 = arith.constant 0 : i32
    %c0_i32_1 = arith.constant 0 : i32
    return %c0_i32, %c0_i32_0 : i32, i32
  }
  func.func @transform_5(%arg0: i32, %arg1: i32) -> (i32, i32) {
    %c0_i32 = arith.constant 0 : i32
    %c0_i32_0 = arith.constant 0 : i32
    return %arg0, %c0_i32 : i32, i32
  }
  func.func @transform_6(%arg0: i32, %arg1: i32) -> (i32, i32) {
    %c0_i32 = arith.constant 0 : i32
    %c0_i32_0 = arith.constant 0 : i32
    return %arg0, %c0_i32 : i32, i32
  }
}

</mosaic_0001>

<llo_original>
// kernel: tpu_custom_call.1
$region0: #{tpu_custom_call.1}
  #allocation0 [shape = 'u32[]', space=smem, size = 0x4, offset = 0x4, fixed_abs, tag = 'smem constant byte address 0x4 - core index']
  #allocation1 [shape = 'u32[144,128]{1,0:T(1,128)}', space=vmem, size = 0x12000, scoped, tag = 'internal scratch']
  #allocation2 [shape = 'f32[8,128]{1,0:T(8,128)}', space=vmem, size = 0x1000, scoped, tag = 'scratch operand']
  %s0 = inlined_call_operand.hbm [shape: bf16[8,1024], index: 0, kind: input, shape index: {}]
  %s1 = inlined_call_operand.hbm [shape: bf16[1024,128], index: 1, kind: input, shape index: {}]
  %s2 = inlined_call_operand.vmem [shape: f32[1,128], index: 2, kind: input, shape index: {}]
  %s3 = inlined_call_operand.hbm [shape: bf16[128,256], index: 3, kind: input, shape index: {}]
  %s4 = inlined_call_operand.vmem [shape: f32[1,256], index: 4, kind: input, shape index: {}]
  %s5 = inlined_call_operand.hbm [shape: f32[8,128], index: 5, kind: output, shape index: {0}]
  %s6 = inlined_call_operand.hbm [shape: f32[8,256], index: 6, kind: output, shape index: {1}]
  %7 = xla_tuple %s5, %s6
  %s8 = sld [smem:[#allocation0]]
  $region81: #{tpu_custom_call.1} parent=0
    _
  %s10 = ssub.s32 1, %s8
  %s11 = scalar_select 0, %s10, %s8
  $region1: #{tpu_custom_call.1} parent=0
    #allocation3 [shape = 'u8[16384]{0}', space=vmem, size = 0x4000, scoped, tag = 'input window, operand 0']
    #allocation4 [shape = 's32[2]{0}', space=sflag, size = 0x8, scoped, tag = 'scoped memory for tpu_custom_call.1']
    #allocation5 [shape = 's32[2]{0}', space=sflag, size = 0x8, scoped, tag = 'scoped memory for tpu_custom_call.1']
    #allocation6 [shape = 'u8[262144]{0}', space=vmem, size = 0x40000, scoped, tag = 'input window, operand 1']
    #allocation7 [shape = 's32[2]{0}', space=sflag, size = 0x8, scoped, tag = 'scoped memory for tpu_custom_call.1']
    #allocation8 [shape = 'u8[65536]{0}', space=vmem, size = 0x10000, scoped, tag = 'input window, operand 3, single buffered']
    #allocation9 [shape = 'u8[4096]{0}', space=vmem, size = 0x1000, scoped, tag = 'output window, operand 0, single buffered']
    #allocation10 [shape = 'u8[8192]{0}', space=vmem, size = 0x2000, scoped, tag = 'output window, operand 1, single buffered']
    #allocation11 [shape = 's32[1]{0}', space=sflag, size = 0x4, scoped, tag = 'scoped memory for tpu_custom_call.1']
    %12 = vsyncpa [#allocation4], 0
    %s13 = scalar_lea.sflag [#allocation4], 1
    %14 = vsyncpa %s13, 0
    %15 = vsyncpa [#allocation7], 0
    %s16 = scalar_lea.sflag [#allocation7], 1
    %17 = vsyncpa %s16, 0
    %18 = vsyncpa [#allocation5], 0
    %19 = vsyncpa [#allocation11], 0
    loop: start=0, step=1, limit=4
    $region2: #{tpu_custom_call.1} parent=1 // loop_pre_header
      _
    $region3: #{tpu_custom_call.1} parent=1 // loop_header
      %s21 = sphi 0, %s25
      %p22 = scmp.ge.s32.totalorder %s21, 4
      %s28 = sphi 0, %s40
      %s29 = sphi 0, %s36
      %s30 = sphi 0, %s28
      %s31 = sphi 0, %s29
      %s32 = sphi 0, %s30
      %s33 = sphi 0, %s31
      %s45 = sphi 0, %s47
      %s48 = sphi 0, %s45
      %s49 = sphi 0, %s48
      %s65 = sphi 0, %s49
      %s71 = sphi 0, %s73
      %s74 = sphi 0, %s71
      %s75 = sphi 0, %s74
      %s91 = sphi 0, %s75
      %s95 = sphi 0, %s95
      %s97 = sphi 0, %s95
      %s98 = sphi 0, %s97
      %s112 = sphi 0, %s98
      %s116 = sphi 0, %s116
      %s118 = sphi 0, %s116
      %s119 = sphi 0, %s118
      %s133 = sphi 0, %s119
      %s137 = sphi 0, %s137
      %s139 = sphi 0, %s137
      %s140 = sphi 0, %s139
      %s154 = sphi 0, %s140
      %s160 = sphi 0, %s162
      %s163 = sphi 0, %s160
      %s164 = sphi 0, %s163
      %s180 = sphi 0, %s164
      %s186 = sphi 0, %s188
      %s189 = sphi 0, %s186
      %s190 = sphi 0, %s189
      %s206 = sphi 0, %s190
    $region4: #{tpu_custom_call.1} parent=1 // loop_header_branch
      %24 = sbr.rel (%p22) target = $region8
    $region5: #{tpu_custom_call.1} parent=1 // loop_body
      %s26 = ssub.s32 %s21, 1
      %s27 = ssub.s32 %s21, 2
      %s34 = sadd.s32 1, %s29
      %p35 = scmp.ge.s32.totalorder %s34, 2
      %s36 = scalar_select %p35, 0, %s34
      %s37 = sadd.s32 1, %s28
      %s38 = scalar_select %p35, %s37, %s28
      %p39 = scmp.ge.s32.totalorder %s38, 1
      %s40 = scalar_select %p39, 0, %s38
      %s41 = ssub.s32 %s28, %s40
      %s42 = ssub.s32 %s29, %s36
      %s43 = sor.u32 %s41, %s42
      %p44 = scmp.eq.s32.totalorder %s43, 0
      %s46 = sadd.s32 %s45, 1
      %s47 = scalar_select %p44, %s45, %s46
      %p50 = pneg %p44
      %p51 = scmp.eq.s32.totalorder %s21, 1
      %p52 = por %p50, %p51
      %p53 = scmp.ne.s32.totalorder %s45, %s48
      %p54 = scmp.eq.s32.totalorder %s21, 0
      %p55 = por %p53, %p54
      %p56 = scmp.ne.s32.totalorder %s45, %s48
      %p57 = scmp.eq.s32.totalorder %s26, 1
      %p58 = por %p56, %p57
      %p59 = scmp.ne.s32.totalorder %s48, %s49
      %p60 = scmp.eq.s32.totalorder %s26, 0
      %p61 = por %p59, %p60
      %p62 = scmp.ne.s32.totalorder %s48, %s49
      %p63 = scmp.eq.s32.totalorder %s27, 1
      %p64 = por %p62, %p63
      %p66 = scmp.ne.s32.totalorder %s49, %s65
      %p67 = scmp.eq.s32.totalorder %s27, 0
      %p68 = por %p66, %p67
      %s69 = ssub.s32 %s29, %s36
      %p70 = scmp.eq.s32.totalorder %s69, 0
      %s72 = sadd.s32 %s71, 1
      %s73 = scalar_select %p70, %s71, %s72
      %p76 = pneg %p70
      %p77 = scmp.eq.s32.totalorder %s21, 1
      %p78 = por %p76, %p77
      %p79 = scmp.ne.s32.totalorder %s71, %s74
      %p80 = scmp.eq.s32.totalorder %s21, 0
      %p81 = por %p79, %p80
      %p82 = scmp.ne.s32.totalorder %s71, %s74
      %p83 = scmp.eq.s32.totalorder %s26, 1
      %p84 = por %p82, %p83
      %p85 = scmp.ne.s32.totalorder %s74, %s75
      %p86 = scmp.eq.s32.totalorder %s26, 0
      %p87 = por %p85, %p86
      %p88 = scmp.ne.s32.totalorder %s74, %s75
      %p89 = scmp.eq.s32.totalorder %s27, 1
      %p90 = por %p88, %p89
      %p92 = scmp.ne.s32.totalorder %s75, %s91
      %p93 = scmp.eq.s32.totalorder %s27, 0
      %p94 = por %p92, %p93
      %s96 = sadd.s32 %s95, 1
      %p99 = scmp.eq.s32.totalorder %s21, 1
      %p100 = scmp.ne.s32.totalorder %s95, %s97
      %p101 = scmp.eq.s32.totalorder %s21, 0
      %p102 = por %p100, %p101
      %p103 = scmp.ne.s32.totalorder %s95, %s97
      %p104 = scmp.eq.s32.totalorder %s26, 1
      %p105 = por %p103, %p104
      %p106 = scmp.ne.s32.totalorder %s97, %s98
      %p107 = scmp.eq.s32.totalorder %s26, 0
      %p108 = por %p106, %p107
      %p109 = scmp.ne.s32.totalorder %s97, %s98
      %p110 = scmp.eq.s32.totalorder %s27, 1
      %p111 = por %p109, %p110
      %p113 = scmp.ne.s32.totalorder %s98, %s112
      %p114 = scmp.eq.s32.totalorder %s27, 0
      %p115 = por %p113, %p114
      %s117 = sadd.s32 %s116, 1
      %p120 = scmp.eq.s32.totalorder %s21, 1
      %p121 = scmp.ne.s32.totalorder %s116, %s118
      %p122 = scmp.eq.s32.totalorder %s21, 0
      %p123 = por %p121, %p122
      %p124 = scmp.ne.s32.totalorder %s116, %s118
      %p125 = scmp.eq.s32.totalorder %s26, 1
      %p126 = por %p124, %p125
      %p127 = scmp.ne.s32.totalorder %s118, %s119
      %p128 = scmp.eq.s32.totalorder %s26, 0
      %p129 = por %p127, %p128
      %p130 = scmp.ne.s32.totalorder %s118, %s119
      %p131 = scmp.eq.s32.totalorder %s27, 1
      %p132 = por %p130, %p131
      %p134 = scmp.ne.s32.totalorder %s119, %s133
      %p135 = scmp.eq.s32.totalorder %s27, 0
      %p136 = por %p134, %p135
      %s138 = sadd.s32 %s137, 1
      %p141 = scmp.eq.s32.totalorder %s21, 1
      %p142 = scmp.ne.s32.totalorder %s137, %s139
      %p143 = scmp.eq.s32.totalorder %s21, 0
      %p144 = por %p142, %p143
      %p145 = scmp.ne.s32.totalorder %s137, %s139
      %p146 = scmp.eq.s32.totalorder %s26, 1
      %p147 = por %p145, %p146
      %p148 = scmp.ne.s32.totalorder %s139, %s140
      %p149 = scmp.eq.s32.totalorder %s26, 0
      %p150 = por %p148, %p149
      %p151 = scmp.ne.s32.totalorder %s139, %s140
      %p152 = scmp.eq.s32.totalorder %s27, 1
      %p153 = por %p151, %p152
      %p155 = scmp.ne.s32.totalorder %s140, %s154
      %p156 = scmp.eq.s32.totalorder %s27, 0
      %p157 = por %p155, %p156
      %s158 = ssub.s32 %s28, %s40
      %p159 = scmp.eq.s32.totalorder %s158, 0
      %s161 = sadd.s32 %s160, 1
      %s162 = scalar_select %p159, %s160, %s161
      %p165 = pneg %p159
      %p166 = scmp.eq.s32.totalorder %s21, 1
      %p167 = por %p165, %p166
      %p168 = scmp.ne.s32.totalorder %s160, %s163
      %p169 = scmp.eq.s32.totalorder %s21, 0
      %p170 = por %p168, %p169
      %p171 = scmp.ne.s32.totalorder %s160, %s163
      %p172 = scmp.eq.s32.totalorder %s26, 1
      %p173 = por %p171, %p172
      %p174 = scmp.ne.s32.totalorder %s163, %s164
      %p175 = scmp.eq.s32.totalorder %s26, 0
      %p176 = por %p174, %p175
      %p177 = scmp.ne.s32.totalorder %s163, %s164
      %p178 = scmp.eq.s32.totalorder %s27, 1
      %p179 = por %p177, %p178
      %p181 = scmp.ne.s32.totalorder %s164, %s180
      %p182 = scmp.eq.s32.totalorder %s27, 0
      %p183 = por %p181, %p182
      %s184 = ssub.s32 %s28, %s40
      %p185 = scmp.eq.s32.totalorder %s184, 0
      %s187 = sadd.s32 %s186, 1
      %s188 = scalar_select %p185, %s186, %s187
      %p191 = pneg %p185
      %p192 = scmp.eq.s32.totalorder %s21, 1
      %p193 = por %p191, %p192
      %p194 = scmp.ne.s32.totalorder %s186, %s189
      %p195 = scmp.eq.s32.totalorder %s21, 0
      %p196 = por %p194, %p195
      %p197 = scmp.ne.s32.totalorder %s186, %s189
      %p198 = scmp.eq.s32.totalorder %s26, 1
      %p199 = por %p197, %p198
      %p200 = scmp.ne.s32.totalorder %s189, %s190
      %p201 = scmp.eq.s32.totalorder %s26, 0
      %p202 = por %p200, %p201
      %p203 = scmp.ne.s32.totalorder %s189, %s190
      %p204 = scmp.eq.s32.totalorder %s27, 1
      %p205 = por %p203, %p204
      %p207 = scmp.ne.s32.totalorder %s190, %s206
      %p208 = scmp.eq.s32.totalorder %s27, 0
      %p209 = por %p207, %p208
      %p210 = scmp.le.s32.totalorder 1, %s21
      %p211 = scmp.lt.s32.totalorder %s21, 3
      %p212 = pnand %p210, %p211
      %p213 = pneg %p212
      // Predicated region
      $region9: #{tpu_custom_call.1} parent=5 // pred_check
        _
      $region10: #{tpu_custom_call.1} parent=5 // pred_check_branch
        %215 = sbr.rel (%p212) target = $region12
      $region11: #{tpu_custom_call.1} parent=5 // pred_region
        %s216 = ssub.s32 %s21, 1
        // Predicated region
        $region13: #{tpu_custom_call.1} parent=11 // pred_check
          %p217 = pneg %p108
        $region14: #{tpu_custom_call.1} parent=11 // pred_check_branch
          %219 = sbr.rel (%p217) target = $region16
        $region15: #{tpu_custom_call.1} parent=11 // pred_region
          _
        $region16: #{tpu_custom_call.1} parent=11 // pred_fallthru
          _
        // Predicated region
        $region17: #{tpu_custom_call.1} parent=11 // pred_check
          %p220 = pneg %p129
        $region18: #{tpu_custom_call.1} parent=11 // pred_check_branch
          %222 = sbr.rel (%p220) target = $region20
        $region19: #{tpu_custom_call.1} parent=11 // pred_region
          %s224 = ssub.s32 2048, 2048
          %225 = vsyncadd [#allocation7], %s224
          %s226 = sshll.u32 [#allocation8], 4
          %s227 = int_to_ptr.vmem [resolvable:$true] %s226
          %232 = dma.hbm_to_vmem [thread:$0]  %s3, 2048, %s227, [#allocation7], 128, 128, 8
        $region20: #{tpu_custom_call.1} parent=11 // pred_fallthru
          _
        // Predicated region
        $region21: #{tpu_custom_call.1} parent=11 // pred_check
          %p233 = pneg %p150
        $region22: #{tpu_custom_call.1} parent=11 // pred_check_branch
          %235 = sbr.rel (%p233) target = $region24
        $region23: #{tpu_custom_call.1} parent=11 // pred_region
          _
        $region24: #{tpu_custom_call.1} parent=11 // pred_fallthru
          _
      $region12: #{tpu_custom_call.1} parent=5 // pred_fallthru
        _
      %p236 = scmp.lt.s32.totalorder %s21, 2
      // Predicated region
      $region25: #{tpu_custom_call.1} parent=5 // pred_check
        %p237 = pneg %p236
      $region26: #{tpu_custom_call.1} parent=5 // pred_check_branch
        %239 = sbr.rel (%p237) target = $region28
      $region27: #{tpu_custom_call.1} parent=5 // pred_region
        // Predicated region
        $region29: #{tpu_custom_call.1} parent=27 // pred_check
          %p240 = pneg %p55
        $region30: #{tpu_custom_call.1} parent=27 // pred_check_branch
          %242 = sbr.rel (%p240) target = $region32
        $region31: #{tpu_custom_call.1} parent=27 // pred_region
          %s243 = sand.u32 %s45, 1
          %s244 = scalar_lea.sflag [#allocation4], %s243
          %s245 = sand.u32 %s45, 1
          %s246 = smul.addr %s245, 16
          %s247 = scalar_lea.vmem [#allocation3], %s246
          %s248 = smul.u32 4, %s29
          %s250 = ssub.s32 256, 256
          %251 = vsyncadd %s244, %s250
          %s252 = smul.addr %s28, 8
          %s253 = sadd.s32 %s248, %s252
          %s254 = smul.addr %s253, 64
          %s255 = scalar_lea.hbm %s0, %s254
          %s257 = sshll.u32 %s247, 4
          %s258 = int_to_ptr.vmem [resolvable:$true] %s257
          %260 = dma.hbm_to_vmem [thread:$0]  %s255, 256, %s258, %s244
        $region32: #{tpu_custom_call.1} parent=27 // pred_fallthru
          _
        // Predicated region
        $region33: #{tpu_custom_call.1} parent=27 // pred_check
          %p261 = pneg %p81
        $region34: #{tpu_custom_call.1} parent=27 // pred_check_branch
          %263 = sbr.rel (%p261) target = $region36
        $region35: #{tpu_custom_call.1} parent=27 // pred_region
          %s264 = sand.u32 %s21, 1
          %s265 = scalar_lea.sflag [#allocation7], %s264
          %s266 = sand.u32 %s71, 1
          %s267 = smul.addr %s266, 256
          %s268 = scalar_lea.vmem [#allocation6], %s267
          %s269 = smul.u32 64, %s29
          %s271 = ssub.s32 4096, 4096
          %272 = vsyncadd %s265, %s271
          %s273 = smul.addr %s269, 64
          %s274 = scalar_lea.hbm %s1, %s273
          %s275 = sshll.u32 %s268, 4
          %s276 = int_to_ptr.vmem [resolvable:$true] %s275
          %281 = dma.hbm_to_vmem [thread:$0]  %s274, 4096, %s276, %s265, 64, 64, 4
        $region36: #{tpu_custom_call.1} parent=27 // pred_fallthru
          _
      $region28: #{tpu_custom_call.1} parent=5 // pred_fallthru
        _
      %p282 = scmp.le.s32.totalorder 1, %s21
      %p283 = scmp.lt.s32.totalorder %s21, 3
      %p284 = pnand %p282, %p283
      %p285 = pneg %p284
      // Predicated region
      $region37: #{tpu_custom_call.1} parent=5 // pred_check
        _
      $region38: #{tpu_custom_call.1} parent=5 // pred_check_branch
        %287 = sbr.rel (%p284) target = $region40
      $region39: #{tpu_custom_call.1} parent=5 // pred_region
        %s288 = ssub.s32 %s21, 1
        %s289 = sand.u32 %s48, 1
        %s290 = scalar_lea.sflag [#allocation4], %s289
        %s291 = sand.u32 %s48, 1
        %s292 = smul.addr %s291, 16
        %s293 = scalar_lea.vmem [#allocation3], %s292
        // Predicated region
        $region41: #{tpu_custom_call.1} parent=39 // pred_check
          %p294 = pneg %p61
        $region42: #{tpu_custom_call.1} parent=39 // pred_check_branch
          %296 = sbr.rel (%p294) target = $region44
        $region43: #{tpu_custom_call.1} parent=39 // pred_region
          %297 = dma.done %s290, 256
        $region44: #{tpu_custom_call.1} parent=39 // pred_fallthru
          _
        %s298 = sand.u32 %s26, 1
        %s299 = scalar_lea.sflag [#allocation7], %s298
        %s300 = sand.u32 %s74, 1
        %s301 = smul.addr %s300, 256
        %s302 = scalar_lea.vmem [#allocation6], %s301
        // Predicated region
        $region45: #{tpu_custom_call.1} parent=39 // pred_check
          %p303 = pneg %p87
        $region46: #{tpu_custom_call.1} parent=39 // pred_check_branch
          %305 = sbr.rel (%p303) target = $region48
        $region47: #{tpu_custom_call.1} parent=39 // pred_region
          %306 = dma.done %s299, 4096
        $region48: #{tpu_custom_call.1} parent=39 // pred_fallthru
          _
        // Predicated region
        $region49: #{tpu_custom_call.1} parent=39 // pred_check
          %p307 = pneg %p129
        $region50: #{tpu_custom_call.1} parent=39 // pred_check_branch
          %309 = sbr.rel (%p307) target = $region52
        $region51: #{tpu_custom_call.1} parent=39 // pred_region
          %310 = dma.done [#allocation7], 2048
        $region52: #{tpu_custom_call.1} parent=39 // pred_fallthru
          _
        %s311 = sand.u32 %s48, 1
        %s312 = scalar_lea.sflag [#allocation4], %s311
        %s313 = sand.u32 %s48, 1
        %s314 = smul.addr %s313, 16
        %s315 = scalar_lea.vmem [#allocation3], %s314
        %p316 = pneg %p61
        %p317 = pneg %p58
        %s318 = sand.u32 %s26, 1
        %s319 = scalar_lea.sflag [#allocation7], %s318
        %s320 = sand.u32 %s74, 1
        %s321 = smul.addr %s320, 256
        %s322 = scalar_lea.vmem [#allocation6], %s321
        %p323 = pneg %p87
        %p324 = pneg %p84
        %p325 = pneg %p108
        %p326 = pneg %p105
        %p327 = pneg %p129
        %p328 = pneg %p126
        %p329 = pneg %p150
        %p330 = pneg %p147
        %p331 = pneg %p176
        %p332 = pneg %p173
        %p333 = pneg %p202
        %p334 = pneg %p199
        %s335 = smul.u32 4, %s31
        %s336 = smul.u32 64, %s31
        %p338 = scmp.eq.s32.totalorder %s31, 0
        // Predicated region
        $region53: #{tpu_custom_call.1} parent=39 // pred_check
          %p339 = pneg %p338
        $region54: #{tpu_custom_call.1} parent=39 // pred_check_branch
          %341 = sbr.rel (%p339) target = $region56
        $region55: #{tpu_custom_call.1} parent=39 // pred_region
          %v342 = vld [vmem:[%s2] sm:$0x1]
          %v344 = vlaneseq
          %v345 = vshrl.u32 %v344, 7
          %v346 = vsub.s32 0, %v345
          %v347 = vrot.slane %v342, %v346
          %349 = vst [vmem:[#allocation2] sm:$0xff] %v347
        $region56: #{tpu_custom_call.1} parent=39 // pred_fallthru
          _
        %v350 = vld [vmem:[#allocation2] sm:$0xff]
        %v351 = vld [vmem:[%s293] sm:$0xff]
        %v352 = vld [vmem:[%s293 + $0x8] sm:$0xff]
        %v353 = vld [vmem:[%s302] sm:$0xf]
        %v354 = vld [vmem:[%s302 + $0x4] sm:$0xf]
        %v355 = vld [vmem:[%s302 + $0x8] sm:$0xf]
        %v356 = vld [vmem:[%s302 + $0xc] sm:$0xf]
        %v357 = vld [vmem:[%s302 + $0x10] sm:$0xf]
        %v358 = vld [vmem:[%s302 + $0x14] sm:$0xf]
        %v359 = vld [vmem:[%s302 + $0x18] sm:$0xf]
        %v360 = vld [vmem:[%s302 + $0x1c] sm:$0xf]
        %v361 = vld [vmem:[%s302 + $0x20] sm:$0xf]
        %v362 = vld [vmem:[%s302 + $0x24] sm:$0xf]
        %v363 = vld [vmem:[%s302 + $0x28] sm:$0xf]
        %v364 = vld [vmem:[%s302 + $0x2c] sm:$0xf]
        %v365 = vld [vmem:[%s302 + $0x30] sm:$0xf]
        %v366 = vld [vmem:[%s302 + $0x34] sm:$0xf]
        %v367 = vld [vmem:[%s302 + $0x38] sm:$0xf]
        %v368 = vld [vmem:[%s302 + $0x3c] sm:$0xf]
        %v369 = vld [vmem:[%s302 + $0x40] sm:$0xf]
        %v370 = vld [vmem:[%s302 + $0x44] sm:$0xf]
        %v371 = vld [vmem:[%s302 + $0x48] sm:$0xf]
        %v372 = vld [vmem:[%s302 + $0x4c] sm:$0xf]
        %v373 = vld [vmem:[%s302 + $0x50] sm:$0xf]
        %v374 = vld [vmem:[%s302 + $0x54] sm:$0xf]
        %v375 = vld [vmem:[%s302 + $0x58] sm:$0xf]
        %v376 = vld [vmem:[%s302 + $0x5c] sm:$0xf]
        %v377 = vld [vmem:[%s302 + $0x60] sm:$0xf]
        %v378 = vld [vmem:[%s302 + $0x64] sm:$0xf]
        %v379 = vld [vmem:[%s302 + $0x68] sm:$0xf]
        %v380 = vld [vmem:[%s302 + $0x6c] sm:$0xf]
        %v381 = vld [vmem:[%s302 + $0x70] sm:$0xf]
        %v382 = vld [vmem:[%s302 + $0x74] sm:$0xf]
        %v383 = vld [vmem:[%s302 + $0x78] sm:$0xf]
        %v384 = vld [vmem:[%s302 + $0x7c] sm:$0xf]
        %v385 = vld [vmem:[%s302 + $0x80] sm:$0xf]
        %v386 = vld [vmem:[%s302 + $0x84] sm:$0xf]
        %v387 = vld [vmem:[%s302 + $0x88] sm:$0xf]
        %v388 = vld [vmem:[%s302 + $0x8c] sm:$0xf]
        %v389 = vld [vmem:[%s302 + $0x90] sm:$0xf]
        %v390 = vld [vmem:[%s302 + $0x94] sm:$0xf]
        %v391 = vld [vmem:[%s302 + $0x98] sm:$0xf]
        %v392 = vld [vmem:[%s302 + $0x9c] sm:$0xf]
        %v393 = vld [vmem:[%s302 + $0xa0] sm:$0xf]
        %v394 = vld [vmem:[%s302 + $0xa4] sm:$0xf]
        %v395 = vld [vmem:[%s302 + $0xa8] sm:$0xf]
        %v396 = vld [vmem:[%s302 + $0xac] sm:$0xf]
        %v397 = vld [vmem:[%s302 + $0xb0] sm:$0xf]
        %v398 = vld [vmem:[%s302 + $0xb4] sm:$0xf]
        %v399 = vld [vmem:[%s302 + $0xb8] sm:$0xf]
        %v400 = vld [vmem:[%s302 + $0xbc] sm:$0xf]
        %v401 = vld [vmem:[%s302 + $0xc0] sm:$0xf]
        %v402 = vld [vmem:[%s302 + $0xc4] sm:$0xf]
        %v403 = vld [vmem:[%s302 + $0xc8] sm:$0xf]
        %v404 = vld [vmem:[%s302 + $0xcc] sm:$0xf]
        %v405 = vld [vmem:[%s302 + $0xd0] sm:$0xf]
        %v406 = vld [vmem:[%s302 + $0xd4] sm:$0xf]
        %v407 = vld [vmem:[%s302 + $0xd8] sm:$0xf]
        %v408 = vld [vmem:[%s302 + $0xdc] sm:$0xf]
        %v409 = vld [vmem:[%s302 + $0xe0] sm:$0xf]
        %v410 = vld [vmem:[%s302 + $0xe4] sm:$0xf]
        %v411 = vld [vmem:[%s302 + $0xe8] sm:$0xf]
        %v412 = vld [vmem:[%s302 + $0xec] sm:$0xf]
        %v413 = vld [vmem:[%s302 + $0xf0] sm:$0xf]
        %v414 = vld [vmem:[%s302 + $0xf4] sm:$0xf]
        %v415 = vld [vmem:[%s302 + $0xf8] sm:$0xf]
        %v416 = vld [vmem:[%s302 + $0xfc] sm:$0xf]
        %v419 = vunpack.c.l.b16 %v351
        %v420 = vunpack.c.h.b16 %v351
        %v421 = vunpack.c.l.b16 %v352
        %v422 = vunpack.c.h.b16 %v352
        %v423 = vpack.c.b16 %v419, %v419
        %v424 = vpack.c.b16 %v420, %v420
        %v425 = vpack.c.b16 %v421, %v421
        %v426 = vpack.c.b16 %v422, %v422
        %v495 = vunpack.c.l.b16 %v353
        %v496 = vunpack.c.l.b16 %v354
        %v497 = vunpack.c.l.b16 %v355
        %v498 = vunpack.c.l.b16 %v356
        %v499 = vunpack.c.l.b16 %v357
        %v500 = vunpack.c.l.b16 %v358
        %v501 = vunpack.c.l.b16 %v359
        %v502 = vunpack.c.l.b16 %v360
        %v503 = vunpack.c.l.b16 %v361
        %v504 = vunpack.c.l.b16 %v362
        %v505 = vunpack.c.l.b16 %v363
        %v506 = vunpack.c.l.b16 %v364
        %v507 = vunpack.c.l.b16 %v365
        %v508 = vunpack.c.l.b16 %v366
        %v509 = vunpack.c.l.b16 %v367
        %v510 = vunpack.c.l.b16 %v368
        %v511 = vunpack.c.l.b16 %v369
        %v512 = vunpack.c.l.b16 %v370
        %v513 = vunpack.c.l.b16 %v371
        %v514 = vunpack.c.l.b16 %v372
        %v515 = vunpack.c.l.b16 %v373
        %v516 = vunpack.c.l.b16 %v374
        %v517 = vunpack.c.l.b16 %v375
        %v518 = vunpack.c.l.b16 %v376
        %v519 = vunpack.c.l.b16 %v377
        %v520 = vunpack.c.l.b16 %v378
        %v521 = vunpack.c.l.b16 %v379
        %v522 = vunpack.c.l.b16 %v380
        %v523 = vunpack.c.l.b16 %v381
        %v524 = vunpack.c.l.b16 %v382
        %v525 = vunpack.c.l.b16 %v383
        %v526 = vunpack.c.l.b16 %v384
        %v527 = vunpack.c.l.b16 %v385
        %v528 = vunpack.c.l.b16 %v386
        %v529 = vunpack.c.l.b16 %v387
        %v530 = vunpack.c.l.b16 %v388
        %v531 = vunpack.c.l.b16 %v389
        %v532 = vunpack.c.l.b16 %v390
        %v533 = vunpack.c.l.b16 %v391
        %v534 = vunpack.c.l.b16 %v392
        %v535 = vunpack.c.l.b16 %v393
        %v536 = vunpack.c.l.b16 %v394
        %v537 = vunpack.c.l.b16 %v395
        %v538 = vunpack.c.l.b16 %v396
        %v539 = vunpack.c.l.b16 %v397
        %v540 = vunpack.c.l.b16 %v398
        %v541 = vunpack.c.l.b16 %v399
        %v542 = vunpack.c.l.b16 %v400
        %v543 = vunpack.c.l.b16 %v401
        %v544 = vunpack.c.l.b16 %v402
        %v545 = vunpack.c.l.b16 %v403
        %v546 = vunpack.c.l.b16 %v404
        %v547 = vunpack.c.l.b16 %v405
        %v548 = vunpack.c.l.b16 %v406
        %v549 = vunpack.c.l.b16 %v407
        %v550 = vunpack.c.l.b16 %v408
        %v551 = vunpack.c.l.b16 %v409
        %v552 = vunpack.c.l.b16 %v410
        %v553 = vunpack.c.l.b16 %v411
        %v554 = vunpack.c.l.b16 %v412
        %v555 = vunpack.c.l.b16 %v413
        %v556 = vunpack.c.l.b16 %v414
        %v557 = vunpack.c.l.b16 %v415
        %v558 = vunpack.c.l.b16 %v416
        %v559 = vpack.c.b16 %v496, %v495
        %v560 = vpack.c.b16 %v498, %v497
        %v561 = vpack.c.b16 %v500, %v499
        %v562 = vpack.c.b16 %v502, %v501
        %v563 = vpack.c.b16 %v504, %v503
        %v564 = vpack.c.b16 %v506, %v505
        %v565 = vpack.c.b16 %v508, %v507
        %v566 = vpack.c.b16 %v510, %v509
        %v567 = vpack.c.b16 %v512, %v511
        %v568 = vpack.c.b16 %v514, %v513
        %v569 = vpack.c.b16 %v516, %v515
        %v570 = vpack.c.b16 %v518, %v517
        %v571 = vpack.c.b16 %v520, %v519
        %v572 = vpack.c.b16 %v522, %v521
        %v573 = vpack.c.b16 %v524, %v523
        %v574 = vpack.c.b16 %v526, %v525
        %v575 = vpack.c.b16 %v528, %v527
        %v576 = vpack.c.b16 %v530, %v529
        %v577 = vpack.c.b16 %v532, %v531
        %v578 = vpack.c.b16 %v534, %v533
        %v579 = vpack.c.b16 %v536, %v535
        %v580 = vpack.c.b16 %v538, %v537
        %v581 = vpack.c.b16 %v540, %v539
        %v582 = vpack.c.b16 %v542, %v541
        %v583 = vpack.c.b16 %v544, %v543
        %v584 = vpack.c.b16 %v546, %v545
        %v585 = vpack.c.b16 %v548, %v547
        %v586 = vpack.c.b16 %v550, %v549
        %v587 = vpack.c.b16 %v552, %v551
        %v588 = vpack.c.b16 %v554, %v553
        %v589 = vpack.c.b16 %v556, %v555
        %v590 = vpack.c.b16 %v558, %v557
        %623 = vmatprep.subr.bf16.mxu0 0
        %624 = vmatpush1.bf16.msra.mxu0 %v559
        %625 = vmatprep.subr.bf16.mxu0 0
        %626 = vmatpush1.bf16.msra.mxu0 %v560
        %627 = vmatprep.subr.bf16.mxu0 0
        %628 = vmatpush1.bf16.msra.mxu0 %v561
        %629 = vmatprep.subr.bf16.mxu0 0
        %630 = vmatpush1.bf16.msra.mxu0 %v562
        %631 = vmatprep.subr.bf16.mxu0 0
        %632 = vmatpush1.bf16.msra.mxu0 %v563
        %633 = vmatprep.subr.bf16.mxu0 0
        %634 = vmatpush1.bf16.msra.mxu0 %v564
        %635 = vmatprep.subr.bf16.mxu0 0
        %636 = vmatpush1.bf16.msra.mxu0 %v565
        %637 = vmatprep.subr.bf16.mxu0 0
        %638 = vmatpush1.bf16.msra.mxu0 %v566
        %639 = vmatprep.subr.bf16.mxu0 0
        %640 = vmatpush1.bf16.msra.mxu0 %v567
        %641 = vmatprep.subr.bf16.mxu0 0
        %642 = vmatpush1.bf16.msra.mxu0 %v568
        %643 = vmatprep.subr.bf16.mxu0 0
        %644 = vmatpush1.bf16.msra.mxu0 %v569
        %645 = vmatprep.subr.bf16.mxu0 0
        %646 = vmatpush1.bf16.msra.mxu0 %v570
        %647 = vmatprep.subr.bf16.mxu0 0
        %648 = vmatpush1.bf16.msra.mxu0 %v571
        %649 = vmatprep.subr.bf16.mxu0 0
        %650 = vmatpush1.bf16.msra.mxu0 %v572
        %651 = vmatprep.subr.bf16.mxu0 0
        %652 = vmatpush1.bf16.msra.mxu0 %v573
        %653 = vmatprep.subr.bf16.mxu0 0
        %654 = vmatpush1.bf16.msra.mxu0 %v574
        %655 = vmatprep.mubr.bf16.mxu0 %v424
        %656 = vmatmul.mubr.bf16.gmra.mrb[0].mxu0 %v423
        %v657 = vpop.f32.mrb[0].mxu0
        %v658 = vadd.f32 0.0, %v657
        %v659 = vpop.f32.mrb[0].mxu0
        %v660 = vpop.f32.mrb[0].mxu0
        %v661 = vpop.f32.mrb[0].mxu0
        %662 = vdwg.mxu0
        %663 = vmatprep.subr.bf16.mxu0 0
        %664 = vmatpush1.bf16.msra.mxu0 %v575
        %665 = vmatprep.subr.bf16.mxu0 0
        %666 = vmatpush1.bf16.msra.mxu0 %v576
        %667 = vmatprep.subr.bf16.mxu0 0
        %668 = vmatpush1.bf16.msra.mxu0 %v577
        %669 = vmatprep.subr.bf16.mxu0 0
        %670 = vmatpush1.bf16.msra.mxu0 %v578
        %671 = vmatprep.subr.bf16.mxu0 0
        %672 = vmatpush1.bf16.msra.mxu0 %v579
        %673 = vmatprep.subr.bf16.mxu0 0
        %674 = vmatpush1.bf16.msra.mxu0 %v580
        %675 = vmatprep.subr.bf16.mxu0 0
        %676 = vmatpush1.bf16.msra.mxu0 %v581
        %677 = vmatprep.subr.bf16.mxu0 0
        %678 = vmatpush1.bf16.msra.mxu0 %v582
        %679 = vmatprep.subr.bf16.mxu0 0
        %680 = vmatpush1.bf16.msra.mxu0 %v583
        %681 = vmatprep.subr.bf16.mxu0 0
        %682 = vmatpush1.bf16.msra.mxu0 %v584
        %683 = vmatprep.subr.bf16.mxu0 0
        %684 = vmatpush1.bf16.msra.mxu0 %v585
        %685 = vmatprep.subr.bf16.mxu0 0
        %686 = vmatpush1.bf16.msra.mxu0 %v586
        %687 = vmatprep.subr.bf16.mxu0 0
        %688 = vmatpush1.bf16.msra.mxu0 %v587
        %689 = vmatprep.subr.bf16.mxu0 0
        %690 = vmatpush1.bf16.msra.mxu0 %v588
        %691 = vmatprep.subr.bf16.mxu0 0
        %692 = vmatpush1.bf16.msra.mxu0 %v589
        %693 = vmatprep.subr.bf16.mxu0 0
        %694 = vmatpush1.bf16.msra.mxu0 %v590
        %695 = vmatprep.mubr.bf16.mxu0 %v426
        %696 = vmatmul.mubr.bf16.gmra.mrb[0].mxu0 %v425
        %v697 = vpop.f32.mrb[0].mxu0
        %v698 = vadd.f32 %v658, %v697
        %v699 = vpop.f32.mrb[0].mxu0
        %v700 = vpop.f32.mrb[0].mxu0
        %v701 = vpop.f32.mrb[0].mxu0
        %702 = vdwg.mxu0
        %v703 = vadd.f32 %v350, %v698
        %704 = vst [vmem:[#allocation2] sm:$0xff] %v703
        %p705 = scmp.eq.s32.totalorder %s31, 1
        // Predicated region
        $region57: #{tpu_custom_call.1} parent=39 // pred_check
          %p706 = pneg %p705
        $region58: #{tpu_custom_call.1} parent=39 // pred_check_branch
          %708 = sbr.rel (%p706) target = $region60
        $region59: #{tpu_custom_call.1} parent=39 // pred_region
          %v709 = vld [vmem:[#allocation2] sm:$0xff]
          %710 = vmax.xlane.f32.xlu0 %v709
          %v711 = vpop.xlane.xlu0 %710
          %v712 = vsub.f32 %v709, %v711
          %v713 = vmul.f32 %v712, 1.442695
          %v714 = vpow.pop %v713
          %715 = vadd.xlane.f32.xlu0 %v714
          %v716 = vpop.xlane.xlu0 %715
          %v717 = vrcp.pop %v716
          %v718 = vmul.f32 %v716, %v717
          %v719 = vsub.f32 2.0, %v718
          %v720 = vmul.f32 %v717, %v719
          %v721 = vmul.f32 %v714, %v720
          %722 = vst [vmem:[#allocation9] sm:$0xff] %v721
          %v723 = vpack.c.bf16 %v721, %v721
          %v724 = vld [vmem:[#allocation8] sm:$0xff]
          %v725 = vld [vmem:[#allocation8 + $0x8] sm:$0xff]
          %v726 = vld [vmem:[#allocation8 + $0x10] sm:$0xff]
          %v727 = vld [vmem:[#allocation8 + $0x18] sm:$0xff]
          %v728 = vld [vmem:[#allocation8 + $0x20] sm:$0xff]
          %v729 = vld [vmem:[#allocation8 + $0x28] sm:$0xff]
          %v730 = vld [vmem:[#allocation8 + $0x30] sm:$0xff]
          %v731 = vld [vmem:[#allocation8 + $0x38] sm:$0xff]
          %v732 = vld [vmem:[#allocation8 + $0x40] sm:$0xff]
          %v733 = vld [vmem:[#allocation8 + $0x48] sm:$0xff]
          %v734 = vld [vmem:[#allocation8 + $0x50] sm:$0xff]
          %v735 = vld [vmem:[#allocation8 + $0x58] sm:$0xff]
          %v736 = vld [vmem:[#allocation8 + $0x60] sm:$0xff]
          %v737 = vld [vmem:[#allocation8 + $0x68] sm:$0xff]
          %v738 = vld [vmem:[#allocation8 + $0x70] sm:$0xff]
          %v739 = vld [vmem:[#allocation8 + $0x78] sm:$0xff]
          %v740 = vld [vmem:[%s4] sm:$0x3]
          %v742 = vlaneseq
          %v743 = vshrl.u32 %v742, 7
          %v744 = vsub.s32 0, %v743
          %v745 = vrot.slane %v740, %v744
          %v746 = vlaneseq
          %v747 = vshrl.u32 %v746, 7
          %v748 = vsub.s32 1, %v747
          %v749 = vrot.slane %v740, %v748
          %v768 = vunpack.c.l.b16 %v724
          %v769 = vunpack.c.h.b16 %v724
          %v770 = vunpack.c.l.b16 %v725
          %v771 = vunpack.c.h.b16 %v725
          %v772 = vunpack.c.l.b16 %v726
          %v773 = vunpack.c.h.b16 %v726
          %v774 = vunpack.c.l.b16 %v727
          %v775 = vunpack.c.h.b16 %v727
          %v776 = vunpack.c.l.b16 %v728
          %v777 = vunpack.c.h.b16 %v728
          %v778 = vunpack.c.l.b16 %v729
          %v779 = vunpack.c.h.b16 %v729
          %v780 = vunpack.c.l.b16 %v730
          %v781 = vunpack.c.h.b16 %v730
          %v782 = vunpack.c.l.b16 %v731
          %v783 = vunpack.c.h.b16 %v731
          %v784 = vunpack.c.l.b16 %v732
          %v785 = vunpack.c.h.b16 %v732
          %v786 = vunpack.c.l.b16 %v733
          %v787 = vunpack.c.h.b16 %v733
          %v788 = vunpack.c.l.b16 %v734
          %v789 = vunpack.c.h.b16 %v734
          %v790 = vunpack.c.l.b16 %v735
          %v791 = vunpack.c.h.b16 %v735
          %v792 = vunpack.c.l.b16 %v736
          %v793 = vunpack.c.h.b16 %v736
          %v794 = vunpack.c.l.b16 %v737
          %v795 = vunpack.c.h.b16 %v737
          %v796 = vunpack.c.l.b16 %v738
          %v797 = vunpack.c.h.b16 %v738
          %v798 = vunpack.c.l.b16 %v739
          %v799 = vunpack.c.h.b16 %v739
          %v800 = vpack.c.b16 %v770, %v768
          %v801 = vpack.c.b16 %v771, %v769
          %v802 = vpack.c.b16 %v774, %v772
          %v803 = vpack.c.b16 %v775, %v773
          %v804 = vpack.c.b16 %v778, %v776
          %v805 = vpack.c.b16 %v779, %v777
          %v806 = vpack.c.b16 %v782, %v780
          %v807 = vpack.c.b16 %v783, %v781
          %v808 = vpack.c.b16 %v786, %v784
          %v809 = vpack.c.b16 %v787, %v785
          %v810 = vpack.c.b16 %v790, %v788
          %v811 = vpack.c.b16 %v791, %v789
          %v812 = vpack.c.b16 %v794, %v792
          %v813 = vpack.c.b16 %v795, %v793
          %v814 = vpack.c.b16 %v798, %v796
          %v815 = vpack.c.b16 %v799, %v797
          %832 = vmatprep.subr.bf16.mxu0 %v801
          %833 = vmatpush1.bf16.msra.mxu0 %v800
          %834 = vmatprep.subr.bf16.mxu0 %v803
          %835 = vmatpush1.bf16.msra.mxu0 %v802
          %836 = vmatprep.subr.bf16.mxu0 %v805
          %837 = vmatpush1.bf16.msra.mxu0 %v804
          %838 = vmatprep.subr.bf16.mxu0 %v807
          %839 = vmatpush1.bf16.msra.mxu0 %v806
          %840 = vmatprep.subr.bf16.mxu0 %v809
          %841 = vmatpush1.bf16.msra.mxu0 %v808
          %842 = vmatprep.subr.bf16.mxu0 %v811
          %843 = vmatpush1.bf16.msra.mxu0 %v810
          %844 = vmatprep.subr.bf16.mxu0 %v813
          %845 = vmatpush1.bf16.msra.mxu0 %v812
          %846 = vmatprep.subr.bf16.mxu0 %v815
          %847 = vmatpush1.bf16.msra.mxu0 %v814
          %848 = vmatprep.subr.bf16.mxu0 0
          %849 = vmatpush1.bf16.msra.mxu0 0
          %850 = vmatprep.subr.bf16.mxu0 0
          %851 = vmatpush1.bf16.msra.mxu0 0
          %852 = vmatprep.subr.bf16.mxu0 0
          %853 = vmatpush1.bf16.msra.mxu0 0
          %854 = vmatprep.subr.bf16.mxu0 0
          %855 = vmatpush1.bf16.msra.mxu0 0
          %856 = vmatprep.subr.bf16.mxu0 0
          %857 = vmatpush1.bf16.msra.mxu0 0
          %858 = vmatprep.subr.bf16.mxu0 0
          %859 = vmatpush1.bf16.msra.mxu0 0
          %860 = vmatprep.subr.bf16.mxu0 0
          %861 = vmatpush1.bf16.msra.mxu0 0
          %862 = vmatprep.subr.bf16.mxu0 0
          %863 = vmatpush1.bf16.msra.mxu0 0
          %864 = vmatprep.mubr.bf16.mxu0 0
          %865 = vmatmul.mubr.bf16.gmra.mrb[0].mxu0 %v723
          %v866 = vpop.f32.mrb[0].mxu0
          %v867 = vadd.f32 %v745, %v866
          %v868 = vpop.f32.mrb[0].mxu0
          %v869 = vadd.f32 %v749, %v868
          %v870 = vpop.f32.mrb[0].mxu0
          %v871 = vpop.f32.mrb[0].mxu0
          %872 = vdwg.mxu0
          %873 = vst [vmem:[#allocation10] sm:$0xff] %v867
          %874 = vst [vmem:[#allocation10 + $0x8] sm:$0xff] %v869
        $region60: #{tpu_custom_call.1} parent=39 // pred_fallthru
          _
        // Predicated region
        $region61: #{tpu_custom_call.1} parent=39 // pred_check
          %p875 = pneg %p173
        $region62: #{tpu_custom_call.1} parent=39 // pred_check_branch
          %877 = sbr.rel (%p875) target = $region64
        $region63: #{tpu_custom_call.1} parent=39 // pred_region
          %s879 = ssub.s32 128, 128
          %880 = vsyncadd [#allocation5], %s879
          %s881 = smul.addr %s30, 128
          %s882 = scalar_lea.hbm %s5, %s881
          %s884 = sshll.u32 [#allocation9], 4
          %s885 = int_to_ptr.vmem [resolvable:$true] %s884
          %887 = dma.vmem_to_hbm [thread:$0]  %s885, 128, %s882, [#allocation5]
        $region64: #{tpu_custom_call.1} parent=39 // pred_fallthru
          _
        // Predicated region
        $region65: #{tpu_custom_call.1} parent=39 // pred_check
          %p888 = pneg %p199
        $region66: #{tpu_custom_call.1} parent=39 // pred_check_branch
          %890 = sbr.rel (%p888) target = $region68
        $region67: #{tpu_custom_call.1} parent=39 // pred_region
          %s892 = ssub.s32 256, 256
          %893 = vsyncadd [#allocation11], %s892
          %s894 = smul.addr %s30, 2
          %s895 = smul.addr %s894, 128
          %s896 = scalar_lea.hbm %s6, %s895
          %s898 = sshll.u32 [#allocation10], 4
          %s899 = int_to_ptr.vmem [resolvable:$true] %s898
          %901 = dma.vmem_to_hbm [thread:$0]  %s899, 256, %s896, [#allocation11]
        $region68: #{tpu_custom_call.1} parent=39 // pred_fallthru
          _
        // Predicated region
        $region69: #{tpu_custom_call.1} parent=39 // pred_check
          %p902 = pneg %p173
        $region70: #{tpu_custom_call.1} parent=39 // pred_check_branch
          %904 = sbr.rel (%p902) target = $region72
        $region71: #{tpu_custom_call.1} parent=39 // pred_region
          %905 = dma.done [#allocation5], 128
        $region72: #{tpu_custom_call.1} parent=39 // pred_fallthru
          _
        // Predicated region
        $region73: #{tpu_custom_call.1} parent=39 // pred_check
          %p906 = pneg %p199
        $region74: #{tpu_custom_call.1} parent=39 // pred_check_branch
          %908 = sbr.rel (%p906) target = $region76
        $region75: #{tpu_custom_call.1} parent=39 // pred_region
          %909 = dma.done [#allocation11], 256
        $region76: #{tpu_custom_call.1} parent=39 // pred_fallthru
          _
      $region40: #{tpu_custom_call.1} parent=5 // pred_fallthru
        _
      %p910 = scmp.le.s32.totalorder 2, %s21
      // Predicated region
      $region77: #{tpu_custom_call.1} parent=5 // pred_check
        %p911 = pneg %p910
      $region78: #{tpu_custom_call.1} parent=5 // pred_check_branch
        %913 = sbr.rel (%p911) target = $region80
      $region79: #{tpu_custom_call.1} parent=5 // pred_region
        %s914 = ssub.s32 %s21, 2
      $region80: #{tpu_custom_call.1} parent=5 // pred_fallthru
        _
    $region6: #{tpu_custom_call.1} parent=1 // loop_footer
      %s25 = sadd.s32 1, %s21
    $region7: #{tpu_custom_call.1} parent=1 // loop_footer_branch
      %20 = sbr.rel target = $region3
    $region8: #{tpu_custom_call.1} parent=1 // loop_exit
      _
    %915 = vsyncpa [#allocation4], 1
    %s916 = scalar_lea.sflag [#allocation4], 1
    %917 = vsyncpa %s916, 1
    %918 = vsyncpa [#allocation7], 1
    %s919 = scalar_lea.sflag [#allocation7], 1
    %920 = vsyncpa %s919, 1
    %921 = vsyncpa [#allocation5], 1
    %s922 = scalar_lea.sflag [#allocation5], 1
    %923 = vsyncpa %s922, 1
    %924 = vsyncpa [#allocation11], 1

</llo_original>
